<compile_context>
chip_gen: v6e
topology: v6e:2x2x1
jax: 0.10.0
libtpu: 0.0.40
codegen_flags: <defaults>
</compile_context>

<pallas_src>
import functools

import jax
import jax.numpy as jnp
from jax import lax
from jax.experimental import pallas as pl
from jax.experimental.pallas import tpu as pltpu


def _aummd_kernel(bi_ref, bj_ref,                          # scalar-prefetch block tables (SMEM)
                  xi_ref, xj_ref, yi_ref, yj_ref,          # (TB, D) tiles, MXU feed dtype
                  sqxi_ref, sqxj_ref, sqyi_ref, sqyj_ref,  # precomputed f32 row norms
                  ux_ref, uy_ref, a_ref,                   # per-step partial outputs
                  *, B, TB, nblk, alpha, t, has_pad):
    s = pl.program_id(0)
    i = bi_ref[s]                      # row-block index
    j = bj_ref[s]                      # col-block index (j >= i by construction)
    is_diag = i == j

    dims = (((1,), (1,)), ((), ()))    # contract the feature axis
    neg_t = jnp.float32(-t)

    def exp_block(a_tile_ref, b_tile_ref, sq_i, sq_j):
        # Gram block on the MXU (bf16-fed by default), f32 accumulate.
        g = lax.dot_general(a_tile_ref[...], b_tile_ref[...], dims,
                            preferred_element_type=jnp.float32)       # (TB, TB)
        d2 = jnp.maximum(sq_i + sq_j - 2.0 * g, 0.0)                  # clamp cancellation
        return jnp.exp(neg_t * d2)

    ex = exp_block(xi_ref, xj_ref, sqxi_ref[...], sqxj_ref[0])        # (TB, TB)
    ey = exp_block(yi_ref, yj_ref, sqyi_ref[...], sqyj_ref[0])

    def write_u(ex_v, ey_v):
        # Sublane-only partial reduce; cross-lane reduce + log happen in the wrapper.
        ux_ref[...] = jnp.sum(ex_v, axis=0, keepdims=True).reshape(ux_ref.shape)
        uy_ref[...] = jnp.sum(ey_v, axis=0, keepdims=True).reshape(uy_ref.shape)

    # ---------------- uniform-loss partials ----------------
    @pl.when(is_diag)
    def _diag():                       # strict upper triangle (+ padding columns)
        r = lax.broadcasted_iota(jnp.int32, (TB, TB), 0)
        c = lax.broadcasted_iota(jnp.int32, (TB, TB), 1)
        m = r < c
        if has_pad:
            m = m & ((j * TB + c) < B)
        write_u(jnp.where(m, ex, 0.0), jnp.where(m, ey, 0.0))

    if has_pad:
        @pl.when(jnp.logical_not(is_diag) & (j == nblk - 1))
        def _last_col():               # off-diagonal block containing padded columns
            c = lax.broadcasted_iota(jnp.int32, (TB, TB), 1)
            m = (j * TB + c) < B
            write_u(jnp.where(m, ex, 0.0), jnp.where(m, ey, 0.0))

        fast_pred = jnp.logical_not(is_diag) & (j != nblk - 1)
    else:
        fast_pred = jnp.logical_not(is_diag)

    @pl.when(fast_pred)
    def _fast():                       # interior off-diagonal: no iota/compare/select
        write_u(ex, ey)

    # ---------------- align-loss partials (diagonal block pairs only) ----------------
    @pl.when(is_diag)
    def _align():
        d = xi_ref[...].astype(jnp.float32) - yi_ref[...].astype(jnp.float32)
        sq = jnp.sum(d * d, axis=1, keepdims=True)                    # (TB, 1)
        if alpha == 2:                 # static Python branch (default path)
            pw = sq
        else:
            pw = jnp.power(jnp.maximum(sq, 0.0), jnp.float32(0.5 * alpha))
        # Padded rows are zero in both x and y -> contribute exactly 0; no mask needed.
        a_ref[...] = pw.reshape(a_ref.shape)

    @pl.when(jnp.logical_not(is_diag))
    def _align_zero():
        a_ref[...] = jnp.zeros(a_ref.shape, jnp.float32)


def aummd_loss(x, y, *, alpha=2, t=2, tau=1, lambd=0, block_rows=256,
               mxu_dtype=jnp.bfloat16):
    """AUMMDLoss.forward(x, y) for 2-D embeddings x, y of shape (B, D).

    block_rows: row-block size. 256 is a good default on v6e/v7x (matches the
      2x256^2 MXU); prefer 128-256 on v5e.  mxu_dtype=None keeps the Gram matmul
      in the input dtype (exact f32 path); the default bf16 feed is faster and
      accurate for L2-normalized embeddings.
    """
    if lambd != 0:
        # TODO(synk): the torch module's lambd-weighted term calls self.mmd_loss,
        # which is not defined anywhere in the source module (its forward would
        # raise); with the default lambd=0 the term is identically zero.
        raise NotImplementedError("MMD term (lambd != 0) has no reference definition")
    assert x.shape == y.shape and x.ndim == 2
    B, D = x.shape

    feed_dtype = jnp.dtype(mxu_dtype) if mxu_dtype is not None else jnp.dtype(x.dtype)
    sub = {4: 8, 2: 16, 1: 32}.get(feed_dtype.itemsize, 8)   # dtype-aware sublane packing
    TB = int(min(block_rows, max(B, sub)))
    TB = max(sub, ((TB + sub - 1) // sub) * sub)
    Bp = ((B + TB - 1) // TB) * TB
    nblk = Bp // TB
    has_pad = Bp != B

    x32 = x.astype(jnp.float32)
    y32 = y.astype(jnp.float32)
    if has_pad:                                    # zero-pad; masked out in-kernel
        x32 = jnp.pad(x32, ((0, Bp - B), (0, 0)))
        y32 = jnp.pad(y32, ((0, Bp - B), (0, 0)))

    # Row squared norms computed once in f32, fed in both layouts the kernel needs.
    sqx = jnp.sum(x32 * x32, axis=1, keepdims=True)           # (Bp, 1) column layout
    sqy = jnp.sum(y32 * y32, axis=1, keepdims=True)
    sqx_row = sqx.reshape(nblk, 1, TB)                         # (nblk, 1, TB) row layout
    sqy_row = sqy.reshape(nblk, 1, TB)

    xk = x32.astype(feed_dtype)
    yk = y32.astype(feed_dtype)

    # Upper-triangular block pairs, scalar-prefetched into SMEM (data-dependent
    # tiling).  Note: on i==j steps the i- and j-tiles are fetched twice; this
    # redundant diagonal DMA is accepted (hidden under the O(TB^2*D) compute).
    pairs = [(bi, bj) for bi in range(nblk) for bj in range(bi, nblk)]
    npairs = len(pairs)
    bi_arr = jnp.asarray([p[0] for p in pairs], dtype=jnp.int32)
    bj_arr = jnp.asarray([p[1] for p in pairs], dtype=jnp.int32)

    kernel = functools.partial(
        _aummd_kernel, B=int(B), TB=int(TB), nblk=int(nblk),
        alpha=alpha, t=float(t), has_pad=bool(has_pad))

    grid_spec = pltpu.PrefetchScalarGridSpec(
        num_scalar_prefetch=2,
        grid=(npairs,),
        in_specs=[
            pl.BlockSpec((TB, D), lambda s, bi, bj: (bi[s], 0)),       # x rows, block i
            pl.BlockSpec((TB, D), lambda s, bi, bj: (bj[s], 0)),       # x rows, block j
            pl.BlockSpec((TB, D), lambda s, bi, bj: (bi[s], 0)),       # y rows, block i
            pl.BlockSpec((TB, D), lambda s, bi, bj: (bj[s], 0)),       # y rows, block j
            pl.BlockSpec((TB, 1), lambda s, bi, bj: (bi[s], 0)),       # ||x||^2, column
            pl.BlockSpec((1, 1, TB), lambda s, bi, bj: (bj[s], 0, 0)), # ||x||^2, row
            pl.BlockSpec((TB, 1), lambda s, bi, bj: (bi[s], 0)),       # ||y||^2, column
            pl.BlockSpec((1, 1, TB), lambda s, bi, bj: (bj[s], 0, 0)), # ||y||^2, row
        ],
        out_specs=[
            pl.BlockSpec((1, 1, TB), lambda s, bi, bj: (s, 0, 0)),     # exp-sum partials (x)
            pl.BlockSpec((1, 1, TB), lambda s, bi, bj: (s, 0, 0)),     # exp-sum partials (y)
            pl.BlockSpec((1, TB, 1), lambda s, bi, bj: (s, 0, 0)),     # align partials
        ],
    )

    # VMEM budget from the actual working set (not the whole v7x VMEM):
    # 4 blocked tensor inputs x 2 pipeline buffers + (TB,TB) f32 temporaries + slack.
    tile_bytes = 4 * 2 * TB * D * feed_dtype.itemsize
    temp_bytes = 8 * TB * TB * 4
    est = tile_bytes + temp_bytes + (4 << 20)
    try:
        phys_vmem = int(pltpu.get_tpu_info().vmem_capacity_bytes)
    except Exception:
        phys_vmem = 64 << 20                        # conservative (v7x per-TC) fallback
    vmem_limit = int(min(max(est, 24 << 20), int(phys_vmem * 0.75)))

    part_ux, part_uy, part_a = pl.pallas_call(
        kernel,
        grid_spec=grid_spec,
        out_shape=(
            jax.ShapeDtypeStruct((npairs, 1, TB), jnp.float32),
            jax.ShapeDtypeStruct((npairs, 1, TB), jnp.float32),
            jax.ShapeDtypeStruct((npairs, TB, 1), jnp.float32),
        ),
        compiler_params=pltpu.CompilerParams(
            dimension_semantics=("parallel",),      # no cross-step carry -> both TCs on v7x
            vmem_limit_bytes=vmem_limit,
        ),
    )(bi_arr, bj_arr, xk, xk, yk, yk, sqx, sqx_row, sqy, sqy_row)

    # Tiny epilogue: cross-partial reduction, normalization and logs.
    n_pairs = 0.5 * B * (B - 1)
    u_loss = (jnp.log(jnp.sum(part_ux) / n_pairs)
              + jnp.log(jnp.sum(part_uy) / n_pairs))
    a_loss = jnp.sum(part_a) / B
    return a_loss + jnp.float32(tau) * u_loss


def _aummd_ref(x, y, *, alpha=2, t=2, tau=1):
    # Pure-JAX reference mirroring the PyTorch forward (mmd term omitted; see TODO).
    a_loss = jnp.mean(jnp.linalg.norm(x - y, axis=1) ** alpha)

    def u_loss(v):
        d2 = jnp.sum((v[:, None, :] - v[None, :, :]) ** 2, axis=-1)
        iu = jnp.triu_indices(v.shape[0], k=1)
        return jnp.log(jnp.mean(jnp.exp(-t * d2[iu])))

    return a_loss + tau * (u_loss(x) + u_loss(y))


if __name__ == "__main__":
    key = jax.random.PRNGKey(0)
    kx, ky = jax.random.split(key)

    batch, dim = 32, 128            # lane-dense feature dim (multiple of 128)
    x = jax.random.normal(kx, (batch, dim), dtype=jnp.float32)
    y = jax.random.normal(ky, (batch, dim), dtype=jnp.float32)
    # These losses are used on L2-normalized embeddings; this also keeps
    # exp(-t * d^2) comfortably inside f32 range.
    x = x / jnp.linalg.norm(x, axis=1, keepdims=True)
    y = y / jnp.linalg.norm(y, axis=1, keepdims=True)

    ref = _aummd_ref(x, y, alpha=2, t=2, tau=1)

    # Default bf16-fed MXU path; multi-block (TB=16 -> 2 blocks -> 3 block pairs).
    loss_bf16 = aummd_loss(x, y, alpha=2, t=2, tau=1, lambd=0, block_rows=16)
    jax.block_until_ready(loss_bf16)
    assert jnp.allclose(loss_bf16, ref, rtol=2e-2, atol=2e-2), (loss_bf16, ref)

    # Exact path: MXU fed with the input dtype (f32) -> tight tolerance.
    loss_f32 = aummd_loss(x, y, alpha=2, t=2, tau=1, lambd=0, block_rows=16,
                          mxu_dtype=None)
    jax.block_until_ready(loss_f32)
    assert jnp.allclose(loss_f32, ref, rtol=1e-4, atol=1e-4), (loss_f32, ref)

    # Ragged batch: exercises zero-padding + triangle/padding masks (B=24, TB=16).
    x2, y2 = x[:24], y[:24]
    ref2 = _aummd_ref(x2, y2, alpha=2, t=2, tau=1)
    loss2 = aummd_loss(x2, y2, alpha=2, t=2, tau=1, lambd=0, block_rows=16,
                       mxu_dtype=None)
    jax.block_until_ready(loss2)
    assert jnp.allclose(loss2, ref2, rtol=1e-4, atol=1e-4), (loss2, ref2)

    # Ragged batch on the default bf16 path.
    loss2b = aummd_loss(x2, y2, alpha=2, t=2, tau=1, lambd=0, block_rows=16)
    jax.block_until_ready(loss2b)
    assert jnp.allclose(loss2b, ref2, rtol=2e-2, atol=2e-2), (loss2b, ref2)

    print("KERNEL_OK")
</pallas_src>

<mosaic_0001>
module attributes {stable_mosaic.version = 11 : i64} {
  func.func @_aummd_kernel(%arg0: i32, %arg1: memref<3xi32, #tpu.memory_space<smem>>, %arg2: memref<3xi32, #tpu.memory_space<smem>>, %arg3: memref<16x128xbf16, #tpu.memory_space<vmem>>, %arg4: memref<16x128xbf16, #tpu.memory_space<vmem>>, %arg5: memref<16x128xbf16, #tpu.memory_space<vmem>>, %arg6: memref<16x128xbf16, #tpu.memory_space<vmem>>, %arg7: memref<16x1xf32, #tpu.memory_space<vmem>>, %arg8: memref<1x1x16xf32, #tpu.memory_space<vmem>>, %arg9: memref<16x1xf32, #tpu.memory_space<vmem>>, %arg10: memref<1x1x16xf32, #tpu.memory_space<vmem>>, %arg11: memref<1x1x16xf32, #tpu.memory_space<vmem>>, %arg12: memref<1x1x16xf32, #tpu.memory_space<vmem>>, %arg13: memref<1x16x1xf32, #tpu.memory_space<vmem>>) attributes {dimension_semantics = [#tpu.dimension_semantics<parallel>], iteration_bounds = array<i64: 3>, scalar_prefetch = 2 : i64, scratch_operands = 0 : i64, tpu.core_type = #tpu.core_type<tc>, window_params = [{transform_indices = @transform_0, window_bounds = array<i64: 16, 128>}, {transform_indices = @transform_1, window_bounds = array<i64: 16, 128>}, {transform_indices = @transform_2, window_bounds = array<i64: 16, 128>}, {transform_indices = @transform_3, window_bounds = array<i64: 16, 128>}, {transform_indices = @transform_4, window_bounds = array<i64: 16, 1>}, {transform_indices = @transform_5, window_bounds = array<i64: 1, 1, 16>}, {transform_indices = @transform_6, window_bounds = array<i64: 16, 1>}, {transform_indices = @transform_7, window_bounds = array<i64: 1, 1, 16>}, {transform_indices = @transform_8, window_bounds = array<i64: 1, 1, 16>}, {transform_indices = @transform_9, window_bounds = array<i64: 1, 1, 16>}, {transform_indices = @transform_10, window_bounds = array<i64: 1, 16, 1>}]} {
    %0 = arith.index_cast %arg0 : i32 to index
    %1 = memref.load %arg1[%0] : memref<3xi32, #tpu.memory_space<smem>>
    %2 = arith.index_cast %arg0 : i32 to index
    %3 = memref.load %arg2[%2] : memref<3xi32, #tpu.memory_space<smem>>
    %4 = arith.cmpi eq, %1, %3 : i32
    %c0 = arith.constant 0 : index
    %c0_0 = arith.constant 0 : index
    %5 = vector.load %arg7[%c0, %c0_0] : memref<16x1xf32, #tpu.memory_space<vmem>>, vector<16x1xf32>
    %c0_1 = arith.constant 0 : index
    %c0_2 = arith.constant 0 : index
    %c0_3 = arith.constant 0 : index
    %6 = vector.load %arg8[%c0_1, %c0_2, %c0_3] : memref<1x1x16xf32, #tpu.memory_space<vmem>>, vector<1x1x16xf32>
    %7 = vector.shape_cast %6 : vector<1x1x16xf32> to vector<1x16xf32>
    %c0_4 = arith.constant 0 : index
    %c0_5 = arith.constant 0 : index
    %8 = vector.load %arg3[%c0_4, %c0_5] : memref<16x128xbf16, #tpu.memory_space<vmem>>, vector<16x128xbf16>
    %c0_6 = arith.constant 0 : index
    %c0_7 = arith.constant 0 : index
    %9 = vector.load %arg4[%c0_6, %c0_7] : memref<16x128xbf16, #tpu.memory_space<vmem>>, vector<16x128xbf16>
    %cst = arith.constant dense<0.000000e+00> : vector<16x16xf32>
    %10 = tpu.matmul %8, %9, %cst {dimension_numbers = #tpu.dot_dimension_numbers<[1], [1], [0], [0], [0, 0, 1, 0], [], []>} : vector<16x128xbf16>, vector<16x128xbf16>, vector<16x16xf32> -> vector<16x16xf32>
    %11 = vector.broadcast %5 : vector<16x1xf32> to vector<16x16xf32>
    %12 = vector.broadcast %7 : vector<1x16xf32> to vector<16x16xf32>
    %13 = arith.addf %11, %12 : vector<16x16xf32>
    %cst_8 = arith.constant 2.000000e+00 : f32
    %14 = vector.broadcast %cst_8 : f32 to vector<16x16xf32>
    %15 = arith.mulf %14, %10 : vector<16x16xf32>
    %16 = arith.subf %13, %15 : vector<16x16xf32>
    %cst_9 = arith.constant 0.000000e+00 : f32
    %17 = vector.broadcast %cst_9 : f32 to vector<16x16xf32>
    %18 = arith.maximumf %16, %17 : vector<16x16xf32>
    %cst_10 = arith.constant -2.000000e+00 : f32
    %19 = vector.broadcast %cst_10 : f32 to vector<16x16xf32>
    %20 = arith.mulf %19, %18 : vector<16x16xf32>
    %21 = math.exp %20 : vector<16x16xf32>
    %c0_11 = arith.constant 0 : index
    %c0_12 = arith.constant 0 : index
    %22 = vector.load %arg9[%c0_11, %c0_12] : memref<16x1xf32, #tpu.memory_space<vmem>>, vector<16x1xf32>
    %c0_13 = arith.constant 0 : index
    %c0_14 = arith.constant 0 : index
    %c0_15 = arith.constant 0 : index
    %23 = vector.load %arg10[%c0_13, %c0_14, %c0_15] : memref<1x1x16xf32, #tpu.memory_space<vmem>>, vector<1x1x16xf32>
    %24 = vector.shape_cast %23 : vector<1x1x16xf32> to vector<1x16xf32>
    %c0_16 = arith.constant 0 : index
    %c0_17 = arith.constant 0 : index
    %25 = vector.load %arg5[%c0_16, %c0_17] : memref<16x128xbf16, #tpu.memory_space<vmem>>, vector<16x128xbf16>
    %c0_18 = arith.constant 0 : index
    %c0_19 = arith.constant 0 : index
    %26 = vector.load %arg6[%c0_18, %c0_19] : memref<16x128xbf16, #tpu.memory_space<vmem>>, vector<16x128xbf16>
    %cst_20 = arith.constant dense<0.000000e+00> : vector<16x16xf32>
    %27 = tpu.matmul %25, %26, %cst_20 {dimension_numbers = #tpu.dot_dimension_numbers<[1], [1], [0], [0], [0, 0, 1, 0], [], []>} : vector<16x128xbf16>, vector<16x128xbf16>, vector<16x16xf32> -> vector<16x16xf32>
    %28 = vector.broadcast %22 : vector<16x1xf32> to vector<16x16xf32>
    %29 = vector.broadcast %24 : vector<1x16xf32> to vector<16x16xf32>
    %30 = arith.addf %28, %29 : vector<16x16xf32>
    %cst_21 = arith.constant 2.000000e+00 : f32
    %31 = vector.broadcast %cst_21 : f32 to vector<16x16xf32>
    %32 = arith.mulf %31, %27 : vector<16x16xf32>
    %33 = arith.subf %30, %32 : vector<16x16xf32>
    %cst_22 = arith.constant 0.000000e+00 : f32
    %34 = vector.broadcast %cst_22 : f32 to vector<16x16xf32>
    %35 = arith.maximumf %33, %34 : vector<16x16xf32>
    %cst_23 = arith.constant -2.000000e+00 : f32
    %36 = vector.broadcast %cst_23 : f32 to vector<16x16xf32>
    %37 = arith.mulf %36, %35 : vector<16x16xf32>
    %38 = math.exp %37 : vector<16x16xf32>
    %39 = arith.extui %4 : i1 to i32
    %c0_i32 = arith.constant 0 : i32
    %40 = arith.cmpi ne, %39, %c0_i32 : i32
    scf.if %40 {
      %49 = tpu.iota {dimensions = array<i32: 0>} : vector<16x16xi32>
      %50 = tpu.iota {dimensions = array<i32: 1>} : vector<16x16xi32>
      %51 = arith.cmpi slt, %49, %50 : vector<16x16xi32>
      %cst_28 = arith.constant 0.000000e+00 : f32
      %52 = vector.broadcast %cst_28 : f32 to vector<16x16xf32>
      %53 = arith.select %51, %21, %52 : vector<16x16xi1>, vector<16x16xf32>
      %cst_29 = arith.constant 0.000000e+00 : f32
      %54 = vector.broadcast %cst_29 : f32 to vector<16x16xf32>
      %55 = arith.select %51, %38, %54 : vector<16x16xi1>, vector<16x16xf32>
      %cst_30 = arith.constant dense<0.000000e+00> : vector<16xf32>
      %56 = vector.multi_reduction <add>, %53, %cst_30 [0] : vector<16x16xf32> to vector<16xf32>
      %57 = vector.shape_cast %56 : vector<16xf32> to vector<1x16xf32>
      %58 = vector.shape_cast %57 : vector<1x16xf32> to vector<1x1x16xf32>
      %c0_31 = arith.constant 0 : index
      %c0_32 = arith.constant 0 : index
      %c0_33 = arith.constant 0 : index
      %59 = vector.load %arg11[%c0_31, %c0_32, %c0_33] : memref<1x1x16xf32, #tpu.memory_space<vmem>>, vector<1x1x16xf32>
      tpu.vector_store %arg11[%c0_31, %c0_32, %c0_33], %58 {strides = array<i32>} : memref<1x1x16xf32, #tpu.memory_space<vmem>>, vector<1x1x16xf32>,
      %cst_34 = arith.constant dense<0.000000e+00> : vector<16xf32>
      %60 = vector.multi_reduction <add>, %55, %cst_34 [0] : vector<16x16xf32> to vector<16xf32>
      %61 = vector.shape_cast %60 : vector<16xf32> to vector<1x16xf32>
      %62 = vector.shape_cast %61 : vector<1x16xf32> to vector<1x1x16xf32>
      %c0_35 = arith.constant 0 : index
      %c0_36 = arith.constant 0 : index
      %c0_37 = arith.constant 0 : index
      %63 = vector.load %arg12[%c0_35, %c0_36, %c0_37] : memref<1x1x16xf32, #tpu.memory_space<vmem>>, vector<1x1x16xf32>
      tpu.vector_store %arg12[%c0_35, %c0_36, %c0_37], %62 {strides = array<i32>} : memref<1x1x16xf32, #tpu.memory_space<vmem>>, vector<1x1x16xf32>,
    } else {
    }
    %true = arith.constant true
    %41 = arith.xori %4, %true : i1
    %42 = arith.extui %41 : i1 to i32
    %c0_i32_24 = arith.constant 0 : i32
    %43 = arith.cmpi ne, %42, %c0_i32_24 : i32
    scf.if %43 {
      %cst_28 = arith.constant dense<0.000000e+00> : vector<16xf32>
      %49 = vector.multi_reduction <add>, %21, %cst_28 [0] : vector<16x16xf32> to vector<16xf32>
      %50 = vector.shape_cast %49 : vector<16xf32> to vector<1x16xf32>
      %51 = vector.shape_cast %50 : vector<1x16xf32> to vector<1x1x16xf32>
      %c0_29 = arith.constant 0 : index
      %c0_30 = arith.constant 0 : index
      %c0_31 = arith.constant 0 : index
      %52 = vector.load %arg11[%c0_29, %c0_30, %c0_31] : memref<1x1x16xf32, #tpu.memory_space<vmem>>, vector<1x1x16xf32>
      tpu.vector_store %arg11[%c0_29, %c0_30, %c0_31], %51 {strides = array<i32>} : memref<1x1x16xf32, #tpu.memory_space<vmem>>, vector<1x1x16xf32>,
      %cst_32 = arith.constant dense<0.000000e+00> : vector<16xf32>
      %53 = vector.multi_reduction <add>, %38, %cst_32 [0] : vector<16x16xf32> to vector<16xf32>
      %54 = vector.shape_cast %53 : vector<16xf32> to vector<1x16xf32>
      %55 = vector.shape_cast %54 : vector<1x16xf32> to vector<1x1x16xf32>
      %c0_33 = arith.constant 0 : index
      %c0_34 = arith.constant 0 : index
      %c0_35 = arith.constant 0 : index
      %56 = vector.load %arg12[%c0_33, %c0_34, %c0_35] : memref<1x1x16xf32, #tpu.memory_space<vmem>>, vector<1x1x16xf32>
      tpu.vector_store %arg12[%c0_33, %c0_34, %c0_35], %55 {strides = array<i32>} : memref<1x1x16xf32, #tpu.memory_space<vmem>>, vector<1x1x16xf32>,
    } else {
    }
    %44 = arith.extui %4 : i1 to i32
    %c0_i32_25 = arith.constant 0 : i32
    %45 = arith.cmpi ne, %44, %c0_i32_25 : i32
    scf.if %45 {
      %c0_28 = arith.constant 0 : index
      %c0_29 = arith.constant 0 : index
      %49 = vector.load %arg3[%c0_28, %c0_29] : memref<16x128xbf16, #tpu.memory_space<vmem>>, vector<16x128xbf16>
      %50 = arith.extf %49 : vector<16x128xbf16> to vector<16x128xf32>
      %c0_30 = arith.constant 0 : index
      %c0_31 = arith.constant 0 : index
      %51 = vector.load %arg5[%c0_30, %c0_31] : memref<16x128xbf16, #tpu.memory_space<vmem>>, vector<16x128xbf16>
      %52 = arith.extf %51 : vector<16x128xbf16> to vector<16x128xf32>
      %53 = arith.subf %50, %52 : vector<16x128xf32>
      %54 = arith.mulf %53, %53 : vector<16x128xf32>
      %cst_32 = arith.constant dense<0.000000e+00> : vector<16xf32>
      %55 = vector.multi_reduction <add>, %54, %cst_32 [1] : vector<16x128xf32> to vector<16xf32>
      %56 = vector.shape_cast %55 : vector<16xf32> to vector<16x1xf32>
      %57 = vector.shape_cast %56 : vector<16x1xf32> to vector<1x16x1xf32>
      %c0_33 = arith.constant 0 : index
      %c0_34 = arith.constant 0 : index
      %c0_35 = arith.constant 0 : index
      %58 = vector.load %arg13[%c0_33, %c0_34, %c0_35] : memref<1x16x1xf32, #tpu.memory_space<vmem>>, vector<1x16x1xf32>
      tpu.vector_store %arg13[%c0_33, %c0_34, %c0_35], %57 {strides = array<i32>} : memref<1x16x1xf32, #tpu.memory_space<vmem>>, vector<1x16x1xf32>,
    } else {
    }
    %true_26 = arith.constant true
    %46 = arith.xori %4, %true_26 : i1
    %47 = arith.extui %46 : i1 to i32
    %c0_i32_27 = arith.constant 0 : i32
    %48 = arith.cmpi ne, %47, %c0_i32_27 : i32
    scf.if %48 {
      %cst_28 = arith.constant 0.000000e+00 : f32
      %49 = vector.broadcast %cst_28 : f32 to vector<1x16x1xf32>
      %c0_29 = arith.constant 0 : index
      %c0_30 = arith.constant 0 : index
      %c0_31 = arith.constant 0 : index
      %50 = vector.load %arg13[%c0_29, %c0_30, %c0_31] : memref<1x16x1xf32, #tpu.memory_space<vmem>>, vector<1x16x1xf32>
      tpu.vector_store %arg13[%c0_29, %c0_30, %c0_31], %49 {strides = array<i32>} : memref<1x16x1xf32, #tpu.memory_space<vmem>>, vector<1x16x1xf32>,
    } else {
    }
    return
  }
  func.func @transform_0(%arg0: i32, %arg1: memref<3xi32, #tpu.memory_space<smem>>, %arg2: memref<3xi32, #tpu.memory_space<smem>>) -> (i32, i32) {
    %0 = arith.index_cast %arg0 : i32 to index
    %1 = memref.load %arg1[%0] : memref<3xi32, #tpu.memory_space<smem>>
    %c0_i32 = arith.constant 0 : i32
    %c0_i32_0 = arith.constant 0 : i32
    return %1, %c0_i32 : i32, i32
  }
  func.func @transform_1(%arg0: i32, %arg1: memref<3xi32, #tpu.memory_space<smem>>, %arg2: memref<3xi32, #tpu.memory_space<smem>>) -> (i32, i32) {
    %0 = arith.index_cast %arg0 : i32 to index
    %1 = memref.load %arg2[%0] : memref<3xi32, #tpu.memory_space<smem>>
    %c0_i32 = arith.constant 0 : i32
    %c0_i32_0 = arith.constant 0 : i32
    return %1, %c0_i32 : i32, i32
  }
  func.func @transform_2(%arg0: i32, %arg1: memref<3xi32, #tpu.memory_space<smem>>, %arg2: memref<3xi32, #tpu.memory_space<smem>>) -> (i32, i32) {
    %0 = arith.index_cast %arg0 : i32 to index
    %1 = memref.load %arg1[%0] : memref<3xi32, #tpu.memory_space<smem>>
    %c0_i32 = arith.constant 0 : i32
    %c0_i32_0 = arith.constant 0 : i32
    return %1, %c0_i32 : i32, i32
  }
  func.func @transform_3(%arg0: i32, %arg1: memref<3xi32, #tpu.memory_space<smem>>, %arg2: memref<3xi32, #tpu.memory_space<smem>>) -> (i32, i32) {
    %0 = arith.index_cast %arg0 : i32 to index
    %1 = memref.load %arg2[%0] : memref<3xi32, #tpu.memory_space<smem>>
    %c0_i32 = arith.constant 0 : i32
    %c0_i32_0 = arith.constant 0 : i32
    return %1, %c0_i32 : i32, i32
  }
  func.func @transform_4(%arg0: i32, %arg1: memref<3xi32, #tpu.memory_space<smem>>, %arg2: memref<3xi32, #tpu.memory_space<smem>>) -> (i32, i32) {
    %0 = arith.index_cast %arg0 : i32 to index
    %1 = memref.load %arg1[%0] : memref<3xi32, #tpu.memory_space<smem>>
    %c0_i32 = arith.constant 0 : i32
    %c0_i32_0 = arith.constant 0 : i32
    return %1, %c0_i32 : i32, i32
  }
  func.func @transform_5(%arg0: i32, %arg1: memref<3xi32, #tpu.memory_space<smem>>, %arg2: memref<3xi32, #tpu.memory_space<smem>>) -> (i32, i32, i32) {
    %0 = arith.index_cast %arg0 : i32 to index
    %1 = memref.load %arg2[%0] : memref<3xi32, #tpu.memory_space<smem>>
    %c0_i32 = arith.constant 0 : i32
    %c0_i32_0 = arith.constant 0 : i32
    %c0_i32_1 = arith.constant 0 : i32
    return %1, %c0_i32, %c0_i32_0 : i32, i32, i32
  }
  func.func @transform_6(%arg0: i32, %arg1: memref<3xi32, #tpu.memory_space<smem>>, %arg2: memref<3xi32, #tpu.memory_space<smem>>) -> (i32, i32) {
    %0 = arith.index_cast %arg0 : i32 to index
    %1 = memref.load %arg1[%0] : memref<3xi32, #tpu.memory_space<smem>>
    %c0_i32 = arith.constant 0 : i32
    %c0_i32_0 = arith.constant 0 : i32
    return %1, %c0_i32 : i32, i32
  }
  func.func @transform_7(%arg0: i32, %arg1: memref<3xi32, #tpu.memory_space<smem>>, %arg2: memref<3xi32, #tpu.memory_space<smem>>) -> (i32, i32, i32) {
    %0 = arith.index_cast %arg0 : i32 to index
    %1 = memref.load %arg2[%0] : memref<3xi32, #tpu.memory_space<smem>>
    %c0_i32 = arith.constant 0 : i32
    %c0_i32_0 = arith.constant 0 : i32
    %c0_i32_1 = arith.constant 0 : i32
    return %1, %c0_i32, %c0_i32_0 : i32, i32, i32
  }
  func.func @transform_8(%arg0: i32, %arg1: memref<3xi32, #tpu.memory_space<smem>>, %arg2: memref<3xi32, #tpu.memory_space<smem>>) -> (i32, i32, i32) {
    %c0_i32 = arith.constant 0 : i32
    %c0_i32_0 = arith.constant 0 : i32
    %c0_i32_1 = arith.constant 0 : i32
    return %arg0, %c0_i32, %c0_i32_0 : i32, i32, i32
  }
  func.func @transform_9(%arg0: i32, %arg1: memref<3xi32, #tpu.memory_space<smem>>, %arg2: memref<3xi32, #tpu.memory_space<smem>>) -> (i32, i32, i32) {
    %c0_i32 = arith.constant 0 : i32
    %c0_i32_0 = arith.constant 0 : i32
    %c0_i32_1 = arith.constant 0 : i32
    return %arg0, %c0_i32, %c0_i32_0 : i32, i32, i32
  }
  func.func @transform_10(%arg0: i32, %arg1: memref<3xi32, #tpu.memory_space<smem>>, %arg2: memref<3xi32, #tpu.memory_space<smem>>) -> (i32, i32, i32) {
    %c0_i32 = arith.constant 0 : i32
    %c0_i32_0 = arith.constant 0 : i32
    %c0_i32_1 = arith.constant 0 : i32
    return %arg0, %c0_i32, %c0_i32_0 : i32, i32, i32
  }
}

</mosaic_0001>

<llo_original>
// kernel: tpu_custom_call.1
$region0: #{tpu_custom_call.1}
  #allocation0 [shape = 'u32[]', space=smem, size = 0x4, offset = 0x4, fixed_abs, tag = 'smem constant byte address 0x4 - core index']
  #allocation1 [shape = 'u32[144,128]{1,0:T(1,128)}', space=vmem, size = 0x12000, scoped, tag = 'internal scratch']
  #allocation2 [shape = 's32[1]{0}', space=sflag, size = 0x4, scoped, tag = 'scoped memory for tpu_custom_call.1']
  #allocation3 [shape = 'u8[512]{0}', space=smem, size = 0x200, scoped, tag = 'prefetched SMEM operand 0']
  #allocation4 [shape = 'u8[512]{0}', space=smem, size = 0x200, scoped, tag = 'prefetched SMEM operand 1']
  %s0 = inlined_call_operand.hbm [shape: s32[3], index: 0, kind: input, shape index: {}]
  %s1 = inlined_call_operand.hbm [shape: s32[3], index: 1, kind: input, shape index: {}]
  %s2 = inlined_call_operand.vmem [shape: bf16[32,128], index: 2, kind: input, shape index: {}]
  %s3 = inlined_call_operand.vmem [shape: bf16[32,128], index: 3, kind: input, shape index: {}]
  %s4 = inlined_call_operand.vmem [shape: bf16[32,128], index: 4, kind: input, shape index: {}]
  %s5 = inlined_call_operand.vmem [shape: bf16[32,128], index: 5, kind: input, shape index: {}]
  %s6 = inlined_call_operand.vmem [shape: f32[32,1], index: 6, kind: input, shape index: {}]
  %s7 = inlined_call_operand.vmem [shape: f32[2,1,16], index: 7, kind: input, shape index: {}]
  %s8 = inlined_call_operand.vmem [shape: f32[32,1], index: 8, kind: input, shape index: {}]
  %s9 = inlined_call_operand.vmem [shape: f32[2,1,16], index: 9, kind: input, shape index: {}]
  %s10 = inlined_call_operand.hbm [shape: f32[3,1,16], index: 10, kind: output, shape index: {0}]
  %s11 = inlined_call_operand.hbm [shape: f32[3,1,16], index: 11, kind: output, shape index: {1}]
  %s12 = inlined_call_operand.vmem [shape: f32[3,16,1], index: 12, kind: output, shape index: {2}]
  %13 = xla_tuple %s10, %s11, %s12
  %s14 = sld [smem:[#allocation0]]
  $region97: #{tpu_custom_call.1} parent=0
    _
  %s16 = ssub.s32 1, %s14
  %s17 = scalar_select 0, %s16, %s14
  %19 = dma.hbm_to_smem %s0, 16, [#allocation3], [#allocation2]
  %21 = dma.hbm_to_smem %s1, 16, [#allocation4], [#allocation2]
  %22 = dma.done [#allocation2], 32
  %23 = sfence
  $region1: #{tpu_custom_call.1} parent=0
    #allocation5 [shape = 'u8[1024]{0}', space=vmem, size = 0x400, scoped, tag = 'output window, operand 0']
    #allocation6 [shape = 's32[2]{0}', space=sflag, size = 0x8, scoped, tag = 'scoped memory for tpu_custom_call.1']
    #allocation7 [shape = 'u8[1024]{0}', space=vmem, size = 0x400, scoped, tag = 'output window, operand 1']
    #allocation8 [shape = 's32[2]{0}', space=sflag, size = 0x8, scoped, tag = 'scoped memory for tpu_custom_call.1']
    %24 = vsyncpa [#allocation6], 0
    %s25 = scalar_lea.sflag [#allocation6], 1
    %26 = vsyncpa %s25, 0
    %27 = vsyncpa [#allocation8], 0
    %s28 = scalar_lea.sflag [#allocation8], 1
    %29 = vsyncpa %s28, 0
    loop: start=0, step=1, limit=5
    $region2: #{tpu_custom_call.1} parent=1 // loop_pre_header
      _
    $region3: #{tpu_custom_call.1} parent=1 // loop_header
      %s31 = sphi 0, %s35
      %p32 = scmp.ge.s32.totalorder %s31, 5
      %s43 = sphi 0, %s45
      %s46 = sphi 0, %s43
      %s47 = sphi 0, %s46
      %s63 = sphi 0, %s47
      %s71 = sphi 0, %s73
      %s74 = sphi 0, %s71
      %s75 = sphi 0, %s74
      %s91 = sphi 0, %s75
      %s99 = sphi 0, %s101
      %s102 = sphi 0, %s99
      %s103 = sphi 0, %s102
      %s119 = sphi 0, %s103
      %s127 = sphi 0, %s129
      %s130 = sphi 0, %s127
      %s131 = sphi 0, %s130
      %s147 = sphi 0, %s131
      %s155 = sphi 0, %s157
      %s158 = sphi 0, %s155
      %s159 = sphi 0, %s158
      %s175 = sphi 0, %s159
      %s183 = sphi 0, %s185
      %s186 = sphi 0, %s183
      %s187 = sphi 0, %s186
      %s203 = sphi 0, %s187
      %s211 = sphi 0, %s213
      %s214 = sphi 0, %s211
      %s215 = sphi 0, %s214
      %s231 = sphi 0, %s215
      %s239 = sphi 0, %s241
      %s242 = sphi 0, %s239
      %s243 = sphi 0, %s242
      %s259 = sphi 0, %s243
      %s265 = sphi 0, %s267
      %s268 = sphi 0, %s265
      %s269 = sphi 0, %s268
      %s285 = sphi 0, %s269
      %s291 = sphi 0, %s293
      %s294 = sphi 0, %s291
      %s295 = sphi 0, %s294
      %s311 = sphi 0, %s295
      %s317 = sphi 0, %s319
      %s320 = sphi 0, %s317
      %s321 = sphi 0, %s320
      %s337 = sphi 0, %s321
    $region4: #{tpu_custom_call.1} parent=1 // loop_header_branch
      %34 = sbr.rel (%p32) target = $region8
    $region5: #{tpu_custom_call.1} parent=1 // loop_body
      %s36 = ssub.s32 %s31, 1
      %s37 = ssub.s32 %s31, 2
      %s38 = sadd.s32 %s31, 1
      %s39 = sld [smem:[#allocation3 + %s31]]
      %s40 = sld [smem:[#allocation3 + %s38]]
      %s41 = ssub.s32 %s39, %s40
      %p42 = scmp.eq.s32.totalorder %s41, 0
      %s44 = sadd.s32 %s43, 1
      %s45 = scalar_select %p42, %s43, %s44
      %p48 = pneg %p42
      %p49 = scmp.eq.s32.totalorder %s31, 2
      %p50 = por %p48, %p49
      %p51 = scmp.ne.s32.totalorder %s43, %s46
      %p52 = scmp.eq.s32.totalorder %s31, 0
      %p53 = por %p51, %p52
      %p54 = scmp.ne.s32.totalorder %s43, %s46
      %p55 = scmp.eq.s32.totalorder %s36, 2
      %p56 = por %p54, %p55
      %p57 = scmp.ne.s32.totalorder %s46, %s47
      %p58 = scmp.eq.s32.totalorder %s36, 0
      %p59 = por %p57, %p58
      %p60 = scmp.ne.s32.totalorder %s46, %s47
      %p61 = scmp.eq.s32.totalorder %s37, 2
      %p62 = por %p60, %p61
      %p64 = scmp.ne.s32.totalorder %s47, %s63
      %p65 = scmp.eq.s32.totalorder %s37, 0
      %p66 = por %p64, %p65
      %s67 = sld [smem:[#allocation4 + %s31]]
      %s68 = sld [smem:[#allocation4 + %s38]]
      %s69 = ssub.s32 %s67, %s68
      %p70 = scmp.eq.s32.totalorder %s69, 0
      %s72 = sadd.s32 %s71, 1
      %s73 = scalar_select %p70, %s71, %s72
      %p76 = pneg %p70
      %p77 = scmp.eq.s32.totalorder %s31, 2
      %p78 = por %p76, %p77
      %p79 = scmp.ne.s32.totalorder %s71, %s74
      %p80 = scmp.eq.s32.totalorder %s31, 0
      %p81 = por %p79, %p80
      %p82 = scmp.ne.s32.totalorder %s71, %s74
      %p83 = scmp.eq.s32.totalorder %s36, 2
      %p84 = por %p82, %p83
      %p85 = scmp.ne.s32.totalorder %s74, %s75
      %p86 = scmp.eq.s32.totalorder %s36, 0
      %p87 = por %p85, %p86
      %p88 = scmp.ne.s32.totalorder %s74, %s75
      %p89 = scmp.eq.s32.totalorder %s37, 2
      %p90 = por %p88, %p89
      %p92 = scmp.ne.s32.totalorder %s75, %s91
      %p93 = scmp.eq.s32.totalorder %s37, 0
      %p94 = por %p92, %p93
      %s95 = sld [smem:[#allocation3 + %s31]]
      %s96 = sld [smem:[#allocation3 + %s38]]
      %s97 = ssub.s32 %s95, %s96
      %p98 = scmp.eq.s32.totalorder %s97, 0
      %s100 = sadd.s32 %s99, 1
      %s101 = scalar_select %p98, %s99, %s100
      %p104 = pneg %p98
      %p105 = scmp.eq.s32.totalorder %s31, 2
      %p106 = por %p104, %p105
      %p107 = scmp.ne.s32.totalorder %s99, %s102
      %p108 = scmp.eq.s32.totalorder %s31, 0
      %p109 = por %p107, %p108
      %p110 = scmp.ne.s32.totalorder %s99, %s102
      %p111 = scmp.eq.s32.totalorder %s36, 2
      %p112 = por %p110, %p111
      %p113 = scmp.ne.s32.totalorder %s102, %s103
      %p114 = scmp.eq.s32.totalorder %s36, 0
      %p115 = por %p113, %p114
      %p116 = scmp.ne.s32.totalorder %s102, %s103
      %p117 = scmp.eq.s32.totalorder %s37, 2
      %p118 = por %p116, %p117
      %p120 = scmp.ne.s32.totalorder %s103, %s119
      %p121 = scmp.eq.s32.totalorder %s37, 0
      %p122 = por %p120, %p121
      %s123 = sld [smem:[#allocation4 + %s31]]
      %s124 = sld [smem:[#allocation4 + %s38]]
      %s125 = ssub.s32 %s123, %s124
      %p126 = scmp.eq.s32.totalorder %s125, 0
      %s128 = sadd.s32 %s127, 1
      %s129 = scalar_select %p126, %s127, %s128
      %p132 = pneg %p126
      %p133 = scmp.eq.s32.totalorder %s31, 2
      %p134 = por %p132, %p133
      %p135 = scmp.ne.s32.totalorder %s127, %s130
      %p136 = scmp.eq.s32.totalorder %s31, 0
      %p137 = por %p135, %p136
      %p138 = scmp.ne.s32.totalorder %s127, %s130
      %p139 = scmp.eq.s32.totalorder %s36, 2
      %p140 = por %p138, %p139
      %p141 = scmp.ne.s32.totalorder %s130, %s131
      %p142 = scmp.eq.s32.totalorder %s36, 0
      %p143 = por %p141, %p142
      %p144 = scmp.ne.s32.totalorder %s130, %s131
      %p145 = scmp.eq.s32.totalorder %s37, 2
      %p146 = por %p144, %p145
      %p148 = scmp.ne.s32.totalorder %s131, %s147
      %p149 = scmp.eq.s32.totalorder %s37, 0
      %p150 = por %p148, %p149
      %s151 = sld [smem:[#allocation3 + %s31]]
      %s152 = sld [smem:[#allocation3 + %s38]]
      %s153 = ssub.s32 %s151, %s152
      %p154 = scmp.eq.s32.totalorder %s153, 0
      %s156 = sadd.s32 %s155, 1
      %s157 = scalar_select %p154, %s155, %s156
      %p160 = pneg %p154
      %p161 = scmp.eq.s32.totalorder %s31, 2
      %p162 = por %p160, %p161
      %p163 = scmp.ne.s32.totalorder %s155, %s158
      %p164 = scmp.eq.s32.totalorder %s31, 0
      %p165 = por %p163, %p164
      %p166 = scmp.ne.s32.totalorder %s155, %s158
      %p167 = scmp.eq.s32.totalorder %s36, 2
      %p168 = por %p166, %p167
      %p169 = scmp.ne.s32.totalorder %s158, %s159
      %p170 = scmp.eq.s32.totalorder %s36, 0
      %p171 = por %p169, %p170
      %p172 = scmp.ne.s32.totalorder %s158, %s159
      %p173 = scmp.eq.s32.totalorder %s37, 2
      %p174 = por %p172, %p173
      %p176 = scmp.ne.s32.totalorder %s159, %s175
      %p177 = scmp.eq.s32.totalorder %s37, 0
      %p178 = por %p176, %p177
      %s179 = sld [smem:[#allocation4 + %s31]]
      %s180 = sld [smem:[#allocation4 + %s38]]
      %s181 = ssub.s32 %s179, %s180
      %p182 = scmp.eq.s32.totalorder %s181, 0
      %s184 = sadd.s32 %s183, 1
      %s185 = scalar_select %p182, %s183, %s184
      %p188 = pneg %p182
      %p189 = scmp.eq.s32.totalorder %s31, 2
      %p190 = por %p188, %p189
      %p191 = scmp.ne.s32.totalorder %s183, %s186
      %p192 = scmp.eq.s32.totalorder %s31, 0
      %p193 = por %p191, %p192
      %p194 = scmp.ne.s32.totalorder %s183, %s186
      %p195 = scmp.eq.s32.totalorder %s36, 2
      %p196 = por %p194, %p195
      %p197 = scmp.ne.s32.totalorder %s186, %s187
      %p198 = scmp.eq.s32.totalorder %s36, 0
      %p199 = por %p197, %p198
      %p200 = scmp.ne.s32.totalorder %s186, %s187
      %p201 = scmp.eq.s32.totalorder %s37, 2
      %p202 = por %p200, %p201
      %p204 = scmp.ne.s32.totalorder %s187, %s203
      %p205 = scmp.eq.s32.totalorder %s37, 0
      %p206 = por %p204, %p205
      %s207 = sld [smem:[#allocation3 + %s31]]
      %s208 = sld [smem:[#allocation3 + %s38]]
      %s209 = ssub.s32 %s207, %s208
      %p210 = scmp.eq.s32.totalorder %s209, 0
      %s212 = sadd.s32 %s211, 1
      %s213 = scalar_select %p210, %s211, %s212
      %p216 = pneg %p210
      %p217 = scmp.eq.s32.totalorder %s31, 2
      %p218 = por %p216, %p217
      %p219 = scmp.ne.s32.totalorder %s211, %s214
      %p220 = scmp.eq.s32.totalorder %s31, 0
      %p221 = por %p219, %p220
      %p222 = scmp.ne.s32.totalorder %s211, %s214
      %p223 = scmp.eq.s32.totalorder %s36, 2
      %p224 = por %p222, %p223
      %p225 = scmp.ne.s32.totalorder %s214, %s215
      %p226 = scmp.eq.s32.totalorder %s36, 0
      %p227 = por %p225, %p226
      %p228 = scmp.ne.s32.totalorder %s214, %s215
      %p229 = scmp.eq.s32.totalorder %s37, 2
      %p230 = por %p228, %p229
      %p232 = scmp.ne.s32.totalorder %s215, %s231
      %p233 = scmp.eq.s32.totalorder %s37, 0
      %p234 = por %p232, %p233
      %s235 = sld [smem:[#allocation4 + %s31]]
      %s236 = sld [smem:[#allocation4 + %s38]]
      %s237 = ssub.s32 %s235, %s236
      %p238 = scmp.eq.s32.totalorder %s237, 0
      %s240 = sadd.s32 %s239, 1
      %s241 = scalar_select %p238, %s239, %s240
      %p244 = pneg %p238
      %p245 = scmp.eq.s32.totalorder %s31, 2
      %p246 = por %p244, %p245
      %p247 = scmp.ne.s32.totalorder %s239, %s242
      %p248 = scmp.eq.s32.totalorder %s31, 0
      %p249 = por %p247, %p248
      %p250 = scmp.ne.s32.totalorder %s239, %s242
      %p251 = scmp.eq.s32.totalorder %s36, 2
      %p252 = por %p250, %p251
      %p253 = scmp.ne.s32.totalorder %s242, %s243
      %p254 = scmp.eq.s32.totalorder %s36, 0
      %p255 = por %p253, %p254
      %p256 = scmp.ne.s32.totalorder %s242, %s243
      %p257 = scmp.eq.s32.totalorder %s37, 2
      %p258 = por %p256, %p257
      %p260 = scmp.ne.s32.totalorder %s243, %s259
      %p261 = scmp.eq.s32.totalorder %s37, 0
      %p262 = por %p260, %p261
      %s263 = ssub.s32 %s31, %s38
      %p264 = scmp.eq.s32.totalorder %s263, 0
      %s266 = sadd.s32 %s265, 1
      %s267 = scalar_select %p264, %s265, %s266
      %p270 = pneg %p264
      %p271 = scmp.eq.s32.totalorder %s31, 2
      %p272 = por %p270, %p271
      %p273 = scmp.ne.s32.totalorder %s265, %s268
      %p274 = scmp.eq.s32.totalorder %s31, 0
      %p275 = por %p273, %p274
      %p276 = scmp.ne.s32.totalorder %s265, %s268
      %p277 = scmp.eq.s32.totalorder %s36, 2
      %p278 = por %p276, %p277
      %p279 = scmp.ne.s32.totalorder %s268, %s269
      %p280 = scmp.eq.s32.totalorder %s36, 0
      %p281 = por %p279, %p280
      %p282 = scmp.ne.s32.totalorder %s268, %s269
      %p283 = scmp.eq.s32.totalorder %s37, 2
      %p284 = por %p282, %p283
      %p286 = scmp.ne.s32.totalorder %s269, %s285
      %p287 = scmp.eq.s32.totalorder %s37, 0
      %p288 = por %p286, %p287
      %s289 = ssub.s32 %s31, %s38
      %p290 = scmp.eq.s32.totalorder %s289, 0
      %s292 = sadd.s32 %s291, 1
      %s293 = scalar_select %p290, %s291, %s292
      %p296 = pneg %p290
      %p297 = scmp.eq.s32.totalorder %s31, 2
      %p298 = por %p296, %p297
      %p299 = scmp.ne.s32.totalorder %s291, %s294
      %p300 = scmp.eq.s32.totalorder %s31, 0
      %p301 = por %p299, %p300
      %p302 = scmp.ne.s32.totalorder %s291, %s294
      %p303 = scmp.eq.s32.totalorder %s36, 2
      %p304 = por %p302, %p303
      %p305 = scmp.ne.s32.totalorder %s294, %s295
      %p306 = scmp.eq.s32.totalorder %s36, 0
      %p307 = por %p305, %p306
      %p308 = scmp.ne.s32.totalorder %s294, %s295
      %p309 = scmp.eq.s32.totalorder %s37, 2
      %p310 = por %p308, %p309
      %p312 = scmp.ne.s32.totalorder %s295, %s311
      %p313 = scmp.eq.s32.totalorder %s37, 0
      %p314 = por %p312, %p313
      %s315 = ssub.s32 %s31, %s38
      %p316 = scmp.eq.s32.totalorder %s315, 0
      %s318 = sadd.s32 %s317, 1
      %s319 = scalar_select %p316, %s317, %s318
      %p322 = pneg %p316
      %p323 = scmp.eq.s32.totalorder %s31, 2
      %p324 = por %p322, %p323
      %p325 = scmp.ne.s32.totalorder %s317, %s320
      %p326 = scmp.eq.s32.totalorder %s31, 0
      %p327 = por %p325, %p326
      %p328 = scmp.ne.s32.totalorder %s317, %s320
      %p329 = scmp.eq.s32.totalorder %s36, 2
      %p330 = por %p328, %p329
      %p331 = scmp.ne.s32.totalorder %s320, %s321
      %p332 = scmp.eq.s32.totalorder %s36, 0
      %p333 = por %p331, %p332
      %p334 = scmp.ne.s32.totalorder %s320, %s321
      %p335 = scmp.eq.s32.totalorder %s37, 2
      %p336 = por %p334, %p335
      %p338 = scmp.ne.s32.totalorder %s321, %s337
      %p339 = scmp.eq.s32.totalorder %s37, 0
      %p340 = por %p338, %p339
      %p341 = scmp.le.s32.totalorder 1, %s31
      %p342 = scmp.lt.s32.totalorder %s31, 4
      %p343 = pnand %p341, %p342
      %p344 = pneg %p343
      // Predicated region
      $region9: #{tpu_custom_call.1} parent=5 // pred_check
        _
      $region10: #{tpu_custom_call.1} parent=5 // pred_check_branch
        %346 = sbr.rel (%p343) target = $region12
      $region11: #{tpu_custom_call.1} parent=5 // pred_region
        %s347 = ssub.s32 %s31, 1
      $region12: #{tpu_custom_call.1} parent=5 // pred_fallthru
        _
      %p348 = scmp.lt.s32.totalorder %s31, 3
      // Predicated region
      $region13: #{tpu_custom_call.1} parent=5 // pred_check
        %p349 = pneg %p348
      $region14: #{tpu_custom_call.1} parent=5 // pred_check_branch
        %351 = sbr.rel (%p349) target = $region16
      $region15: #{tpu_custom_call.1} parent=5 // pred_region
        // Predicated region
        $region17: #{tpu_custom_call.1} parent=15 // pred_check
          %p352 = pneg %p53
        $region18: #{tpu_custom_call.1} parent=15 // pred_check_branch
          %354 = sbr.rel (%p352) target = $region20
        $region19: #{tpu_custom_call.1} parent=15 // pred_region
          %s355 = sld [smem:[#allocation3 + %s31]]
          %s356 = smul.u32 2, %s355
          %p357 = scmp.lt.s32.totalorder %s356, 3
          %s358 = scalar_select %p357, %s356, 3
          %s359 = smul.addr %s358, 4
          %s360 = scalar_lea.vmem %s2, %s359
          %s361 = sld [smem:[#allocation3 + %s31]]
          %s362 = smul.u32 2, %s361
        $region20: #{tpu_custom_call.1} parent=15 // pred_fallthru
          _
        // Predicated region
        $region21: #{tpu_custom_call.1} parent=15 // pred_check
          %p363 = pneg %p81
        $region22: #{tpu_custom_call.1} parent=15 // pred_check_branch
          %365 = sbr.rel (%p363) target = $region24
        $region23: #{tpu_custom_call.1} parent=15 // pred_region
          %s366 = sld [smem:[#allocation4 + %s31]]
          %s367 = smul.u32 2, %s366
          %p368 = scmp.lt.s32.totalorder %s367, 3
          %s369 = scalar_select %p368, %s367, 3
          %s370 = smul.addr %s369, 4
          %s371 = scalar_lea.vmem %s3, %s370
          %s372 = sld [smem:[#allocation4 + %s31]]
          %s373 = smul.u32 2, %s372
        $region24: #{tpu_custom_call.1} parent=15 // pred_fallthru
          _
        // Predicated region
        $region25: #{tpu_custom_call.1} parent=15 // pred_check
          %p374 = pneg %p109
        $region26: #{tpu_custom_call.1} parent=15 // pred_check_branch
          %376 = sbr.rel (%p374) target = $region28
        $region27: #{tpu_custom_call.1} parent=15 // pred_region
          %s377 = sld [smem:[#allocation3 + %s31]]
          %s378 = smul.u32 2, %s377
          %p379 = scmp.lt.s32.totalorder %s378, 3
          %s380 = scalar_select %p379, %s378, 3
          %s381 = smul.addr %s380, 4
          %s382 = scalar_lea.vmem %s4, %s381
          %s383 = sld [smem:[#allocation3 + %s31]]
          %s384 = smul.u32 2, %s383
        $region28: #{tpu_custom_call.1} parent=15 // pred_fallthru
          _
        // Predicated region
        $region29: #{tpu_custom_call.1} parent=15 // pred_check
          %p385 = pneg %p137
        $region30: #{tpu_custom_call.1} parent=15 // pred_check_branch
          %387 = sbr.rel (%p385) target = $region32
        $region31: #{tpu_custom_call.1} parent=15 // pred_region
          %s388 = sld [smem:[#allocation4 + %s31]]
          %s389 = smul.u32 2, %s388
          %p390 = scmp.lt.s32.totalorder %s389, 3
          %s391 = scalar_select %p390, %s389, 3
          %s392 = smul.addr %s391, 4
          %s393 = scalar_lea.vmem %s5, %s392
          %s394 = sld [smem:[#allocation4 + %s31]]
          %s395 = smul.u32 2, %s394
        $region32: #{tpu_custom_call.1} parent=15 // pred_fallthru
          _
        // Predicated region
        $region33: #{tpu_custom_call.1} parent=15 // pred_check
          %p396 = pneg %p165
        $region34: #{tpu_custom_call.1} parent=15 // pred_check_branch
          %398 = sbr.rel (%p396) target = $region36
        $region35: #{tpu_custom_call.1} parent=15 // pred_region
          %s399 = sld [smem:[#allocation3 + %s31]]
          %s400 = smul.u32 2, %s399
          %p401 = scmp.lt.s32.totalorder %s400, 3
          %s402 = scalar_select %p401, %s400, 3
          %s403 = smul.addr %s402, 8
          %s404 = scalar_lea.vmem %s6, %s403
          %s405 = sld [smem:[#allocation3 + %s31]]
          %s406 = smul.u32 2, %s405
        $region36: #{tpu_custom_call.1} parent=15 // pred_fallthru
          _
        // Predicated region
        $region37: #{tpu_custom_call.1} parent=15 // pred_check
          %p407 = pneg %p193
        $region38: #{tpu_custom_call.1} parent=15 // pred_check_branch
          %409 = sbr.rel (%p407) target = $region40
        $region39: #{tpu_custom_call.1} parent=15 // pred_region
          %s410 = sld [smem:[#allocation4 + %s31]]
          %p411 = scmp.lt.s32.totalorder %s410, 1
          %s412 = scalar_select %p411, %s410, 1
          %s413 = scalar_lea.vmem %s7, %s412
          %s414 = sld [smem:[#allocation4 + %s31]]
        $region40: #{tpu_custom_call.1} parent=15 // pred_fallthru
          _
        // Predicated region
        $region41: #{tpu_custom_call.1} parent=15 // pred_check
          %p415 = pneg %p221
        $region42: #{tpu_custom_call.1} parent=15 // pred_check_branch
          %417 = sbr.rel (%p415) target = $region44
        $region43: #{tpu_custom_call.1} parent=15 // pred_region
          %s418 = sld [smem:[#allocation3 + %s31]]
          %s419 = smul.u32 2, %s418
          %p420 = scmp.lt.s32.totalorder %s419, 3
          %s421 = scalar_select %p420, %s419, 3
          %s422 = smul.addr %s421, 8
          %s423 = scalar_lea.vmem %s8, %s422
          %s424 = sld [smem:[#allocation3 + %s31]]
          %s425 = smul.u32 2, %s424
        $region44: #{tpu_custom_call.1} parent=15 // pred_fallthru
          _
        // Predicated region
        $region45: #{tpu_custom_call.1} parent=15 // pred_check
          %p426 = pneg %p249
        $region46: #{tpu_custom_call.1} parent=15 // pred_check_branch
          %428 = sbr.rel (%p426) target = $region48
        $region47: #{tpu_custom_call.1} parent=15 // pred_region
          %s429 = sld [smem:[#allocation4 + %s31]]
          %p430 = scmp.lt.s32.totalorder %s429, 1
          %s431 = scalar_select %p430, %s429, 1
          %s432 = scalar_lea.vmem %s9, %s431
          %s433 = sld [smem:[#allocation4 + %s31]]
        $region48: #{tpu_custom_call.1} parent=15 // pred_fallthru
          _
      $region16: #{tpu_custom_call.1} parent=5 // pred_fallthru
        _
      %p434 = scmp.le.s32.totalorder 1, %s31
      %p435 = scmp.lt.s32.totalorder %s31, 4
      %p436 = pnand %p434, %p435
      %p437 = pneg %p436
      // Predicated region
      $region49: #{tpu_custom_call.1} parent=5 // pred_check
        _
      $region50: #{tpu_custom_call.1} parent=5 // pred_check_branch
        %439 = sbr.rel (%p436) target = $region52
      $region51: #{tpu_custom_call.1} parent=5 // pred_region
        %s440 = ssub.s32 %s31, 1
        %s441 = sld [smem:[#allocation3 + %s36]]
        %s442 = smul.u32 2, %s441
        %p443 = scmp.lt.s32.totalorder %s442, 3
        %s444 = scalar_select %p443, %s442, 3
        %s445 = smul.addr %s444, 4
        %s446 = scalar_lea.vmem %s2, %s445
        %p447 = pneg %p59
        %p448 = pneg %p56
        %s449 = sld [smem:[#allocation4 + %s36]]
        %s450 = smul.u32 2, %s449
        %p451 = scmp.lt.s32.totalorder %s450, 3
        %s452 = scalar_select %p451, %s450, 3
        %s453 = smul.addr %s452, 4
        %s454 = scalar_lea.vmem %s3, %s453
        %p455 = pneg %p87
        %p456 = pneg %p84
        %s457 = sld [smem:[#allocation3 + %s36]]
        %s458 = smul.u32 2, %s457
        %p459 = scmp.lt.s32.totalorder %s458, 3
        %s460 = scalar_select %p459, %s458, 3
        %s461 = smul.addr %s460, 4
        %s462 = scalar_lea.vmem %s4, %s461
        %p463 = pneg %p115
        %p464 = pneg %p112
        %s465 = sld [smem:[#allocation4 + %s36]]
        %s466 = smul.u32 2, %s465
        %p467 = scmp.lt.s32.totalorder %s466, 3
        %s468 = scalar_select %p467, %s466, 3
        %s469 = smul.addr %s468, 4
        %s470 = scalar_lea.vmem %s5, %s469
        %p471 = pneg %p143
        %p472 = pneg %p140
        %s473 = sld [smem:[#allocation3 + %s36]]
        %s474 = smul.u32 2, %s473
        %p475 = scmp.lt.s32.totalorder %s474, 3
        %s476 = scalar_select %p475, %s474, 3
        %s477 = smul.addr %s476, 8
        %s478 = scalar_lea.vmem %s6, %s477
        %p479 = pneg %p171
        %p480 = pneg %p168
        %s481 = sld [smem:[#allocation4 + %s36]]
        %p482 = scmp.lt.s32.totalorder %s481, 1
        %s483 = scalar_select %p482, %s481, 1
        %s484 = scalar_lea.vmem %s7, %s483
        %p485 = pneg %p199
        %p486 = pneg %p196
        %s487 = sld [smem:[#allocation3 + %s36]]
        %s488 = smul.u32 2, %s487
        %p489 = scmp.lt.s32.totalorder %s488, 3
        %s490 = scalar_select %p489, %s488, 3
        %s491 = smul.addr %s490, 8
        %s492 = scalar_lea.vmem %s8, %s491
        %p493 = pneg %p227
        %p494 = pneg %p224
        %s495 = sld [smem:[#allocation4 + %s36]]
        %p496 = scmp.lt.s32.totalorder %s495, 1
        %s497 = scalar_select %p496, %s495, 1
        %s498 = scalar_lea.vmem %s9, %s497
        %p499 = pneg %p255
        %p500 = pneg %p252
        %p501 = pneg %p281
        %p502 = pneg %p278
        %s503 = sand.u32 %s268, 1
        %s504 = scalar_lea.sflag [#allocation6], %s503
        %s505 = sand.u32 %s268, 1
        %s506 = scalar_lea.vmem [#allocation5], %s505
        %p507 = pneg %p307
        %p508 = pneg %p304
        %s509 = sand.u32 %s294, 1
        %s510 = scalar_lea.sflag [#allocation8], %s509
        %s511 = sand.u32 %s294, 1
        %s512 = scalar_lea.vmem [#allocation7], %s511
        %p513 = pneg %p333
        %p514 = pneg %p330
        %p515 = scmp.lt.s32.totalorder %s36, 2
        %s516 = scalar_select %p515, %s36, 2
        %s517 = smul.addr %s516, 2
        %s518 = smul.addr %s517, 8
        %s519 = scalar_lea.vmem %s12, %s518
        %s520 = sld [smem:[#allocation3 + %s36]]
        %s521 = smul.u32 2, %s520
        %p522 = scmp.lt.s32.totalorder %s521, 3
        %s523 = scalar_select %p522, %s521, 3
        %s524 = smul.addr %s523, 4
        %s525 = scalar_lea.vmem %s2, %s524
        %s526 = sld [smem:[#allocation3 + %s36]]
        %s527 = smul.u32 2, %s526
        %s528 = sld [smem:[#allocation4 + %s36]]
        %s529 = smul.u32 2, %s528
        %p530 = scmp.lt.s32.totalorder %s529, 3
        %s531 = scalar_select %p530, %s529, 3
        %s532 = smul.addr %s531, 4
        %s533 = scalar_lea.vmem %s3, %s532
        %s534 = sld [smem:[#allocation4 + %s36]]
        %s535 = smul.u32 2, %s534
        %s536 = sld [smem:[#allocation3 + %s36]]
        %s537 = smul.u32 2, %s536
        %p538 = scmp.lt.s32.totalorder %s537, 3
        %s539 = scalar_select %p538, %s537, 3
        %s540 = smul.addr %s539, 4
        %s541 = scalar_lea.vmem %s4, %s540
        %s542 = sld [smem:[#allocation3 + %s36]]
        %s543 = smul.u32 2, %s542
        %s544 = sld [smem:[#allocation4 + %s36]]
        %s545 = smul.u32 2, %s544
        %p546 = scmp.lt.s32.totalorder %s545, 3
        %s547 = scalar_select %p546, %s545, 3
        %s548 = smul.addr %s547, 4
        %s549 = scalar_lea.vmem %s5, %s548
        %s550 = sld [smem:[#allocation4 + %s36]]
        %s551 = smul.u32 2, %s550
        %s552 = sld [smem:[#allocation3 + %s36]]
        %s553 = smul.u32 2, %s552
        %p554 = scmp.lt.s32.totalorder %s553, 3
        %s555 = scalar_select %p554, %s553, 3
        %s556 = smul.addr %s555, 8
        %s557 = scalar_lea.vmem %s6, %s556
        %s558 = sld [smem:[#allocation3 + %s36]]
        %s559 = smul.u32 2, %s558
        %s560 = sld [smem:[#allocation4 + %s36]]
        %p561 = scmp.lt.s32.totalorder %s560, 1
        %s562 = scalar_select %p561, %s560, 1
        %s563 = scalar_lea.vmem %s7, %s562
        %s564 = sld [smem:[#allocation4 + %s36]]
        %s565 = sld [smem:[#allocation3 + %s36]]
        %s566 = smul.u32 2, %s565
        %p567 = scmp.lt.s32.totalorder %s566, 3
        %s568 = scalar_select %p567, %s566, 3
        %s569 = smul.addr %s568, 8
        %s570 = scalar_lea.vmem %s8, %s569
        %s571 = sld [smem:[#allocation3 + %s36]]
        %s572 = smul.u32 2, %s571
        %s573 = sld [smem:[#allocation4 + %s36]]
        %p574 = scmp.lt.s32.totalorder %s573, 1
        %s575 = scalar_select %p574, %s573, 1
        %s576 = scalar_lea.vmem %s9, %s575
        %s577 = sld [smem:[#allocation4 + %s36]]
        %p578 = scmp.lt.s32.totalorder %s36, 2
        %s579 = scalar_select %p578, %s36, 2
        %s580 = smul.addr %s579, 2
        %s581 = smul.addr %s580, 8
        %s582 = scalar_lea.vmem %s12, %s581
        %s584 = sld [smem:[#allocation3 + %s36]]
        %s585 = sld [smem:[#allocation4 + %s36]]
        %p586 = scmp.eq.s32.totalorder %s584, %s585
        %v587 = vld [vmem:[%s557] sm:$0xff]
        %v588 = vld [vmem:[%s557 + $0x8] sm:$0xff]
        %v589 = vld [vmem:[%s563] sm:$0x1]
        %v590 = vld [vmem:[%s525] sm:$0xf]
        %v591 = vld [vmem:[%s525 + $0x4] sm:$0xf]
        %v592 = vld [vmem:[%s533] sm:$0xf]
        %v593 = vld [vmem:[%s533 + $0x4] sm:$0xf]
        %v596 = vunpack.c.l.b16 %v590
        %v597 = vunpack.c.l.b16 %v591
        %v598 = vpack.c.b16 %v597, %v596
        %v602 = vunpack.c.l.b16 %v592
        %v603 = vunpack.c.l.b16 %v593
        %v604 = vpack.c.b16 %v603, %v602
        %606 = vmatprep.subr.bf16.mxu0 0
        %607 = vmatpush1.bf16.xpose.msra.mxu0 0
        %608 = vmatprep.subr.bf16.mxu0 0
        %609 = vmatpush1.bf16.xpose.msra.mxu0 0
        %610 = vmatprep.subr.bf16.mxu0 0
        %611 = vmatpush1.bf16.xpose.msra.mxu0 0
        %612 = vmatprep.subr.bf16.mxu0 0
        %613 = vmatpush1.bf16.xpose.msra.mxu0 0
        %614 = vmatprep.subr.bf16.mxu0 0
        %615 = vmatpush1.bf16.xpose.msra.mxu0 0
        %616 = vmatprep.subr.bf16.mxu0 0
        %617 = vmatpush1.bf16.xpose.msra.mxu0 0
        %618 = vmatprep.subr.bf16.mxu0 0
        %619 = vmatpush1.bf16.xpose.msra.mxu0 0
        %620 = vmatprep.subr.bf16.mxu0 0
        %621 = vmatpush1.bf16.xpose.msra.mxu0 %v604
        %622 = vmatprep.subr.bf16.mxu0 0
        %623 = vmatpush2.bf16.xpose.msra.mxu0 0
        %624 = vmatprep.subr.bf16.mxu0 0
        %625 = vmatpush2.bf16.xpose.msra.mxu0 0
        %626 = vmatprep.subr.bf16.mxu0 0
        %627 = vmatpush2.bf16.xpose.msra.mxu0 0
        %628 = vmatprep.subr.bf16.mxu0 0
        %629 = vmatpush2.bf16.xpose.msra.mxu0 0
        %630 = vmatprep.subr.bf16.mxu0 0
        %631 = vmatpush2.bf16.xpose.msra.mxu0 0
        %632 = vmatprep.subr.bf16.mxu0 0
        %633 = vmatpush2.bf16.xpose.msra.mxu0 0
        %634 = vmatprep.subr.bf16.mxu0 0
        %635 = vmatpush2.bf16.xpose.msra.mxu0 0
        %636 = vmatprep.subr.bf16.mxu0 0
        %637 = vmatpush2.bf16.xpose.msra.mxu0 0
        %638 = vmatprep.mubr.bf16.mxu0 0
        %639 = vmatmul.mubr.bf16.gmra.mxu0 %v598
        %v640 = vpop.f32.mrf.mxu0
        %v641 = vadd.f32 0.0, %v640
        %v642 = vpop.f32.mrf.mxu0
        %v643 = vpop.f32.mrf.mxu0
        %v644 = vadd.f32 0.0, %v643
        %v645 = vpop.f32.mrf.mxu0
        %646 = vdwg.mxu0
        %648 = vset.pattern.permute.xlu0 0
        %649 = vperm.xlu0 %648, %v587
        %v650 = vpop.permute.xlu0 %649
        %653 = vset.pattern.permute.xlu0 0
        %654 = vperm.xlu0 %653, %v588
        %v655 = vpop.permute.xlu0 %654
        %v658 = vlaneseq
        %v659 = vshrl.u32 %v658, 7
        %v660 = vsub.s32 0, %v659
        %v661 = vrot.slane %v589, %v660
        %v663 = vadd.f32 %v650, %v661
        %v664 = vadd.f32 %v655, %v661
        %v665 = vmul.f32 %v641, 2.0
        %v666 = vmul.f32 %v644, 2.0
        %v667 = vsub.f32 %v663, %v665
        %v668 = vsub.f32 %v664, %v666
        %v669 = vmax.f32 %v667, 0.0
        %v670 = vmax.f32 %v668, 0.0
        %v671 = vmul.f32 %v669, -2.0
        %v672 = vmul.f32 %v670, -2.0
        %v673 = vmul.f32 %v671, 1.442695
        %v674 = vpow.pop %v673
        %v675 = vmul.f32 %v672, 1.442695
        %v676 = vpow.pop %v675
        %v677 = vld [vmem:[%s570] sm:$0xff]
        %v678 = vld [vmem:[%s570 + $0x8] sm:$0xff]
        %v679 = vld [vmem:[%s576] sm:$0x1]
        %v680 = vld [vmem:[%s541] sm:$0xf]
        %v681 = vld [vmem:[%s541 + $0x4] sm:$0xf]
        %v682 = vld [vmem:[%s549] sm:$0xf]
        %v683 = vld [vmem:[%s549 + $0x4] sm:$0xf]
        %v686 = vunpack.c.l.b16 %v680
        %v687 = vunpack.c.l.b16 %v681
        %v688 = vpack.c.b16 %v687, %v686
        %v692 = vunpack.c.l.b16 %v682
        %v693 = vunpack.c.l.b16 %v683
        %v694 = vpack.c.b16 %v693, %v692
        %696 = vmatprep.subr.bf16.mxu0 0
        %697 = vmatpush1.bf16.xpose.msra.mxu0 0
        %698 = vmatprep.subr.bf16.mxu0 0
        %699 = vmatpush1.bf16.xpose.msra.mxu0 0
        %700 = vmatprep.subr.bf16.mxu0 0
        %701 = vmatpush1.bf16.xpose.msra.mxu0 0
        %702 = vmatprep.subr.bf16.mxu0 0
        %703 = vmatpush1.bf16.xpose.msra.mxu0 0
        %704 = vmatprep.subr.bf16.mxu0 0
        %705 = vmatpush1.bf16.xpose.msra.mxu0 0
        %706 = vmatprep.subr.bf16.mxu0 0
        %707 = vmatpush1.bf16.xpose.msra.mxu0 0
        %708 = vmatprep.subr.bf16.mxu0 0
        %709 = vmatpush1.bf16.xpose.msra.mxu0 0
        %710 = vmatprep.subr.bf16.mxu0 0
        %711 = vmatpush1.bf16.xpose.msra.mxu0 %v694
        %712 = vmatprep.subr.bf16.mxu0 0
        %713 = vmatpush2.bf16.xpose.msra.mxu0 0
        %714 = vmatprep.subr.bf16.mxu0 0
        %715 = vmatpush2.bf16.xpose.msra.mxu0 0
        %716 = vmatprep.subr.bf16.mxu0 0
        %717 = vmatpush2.bf16.xpose.msra.mxu0 0
        %718 = vmatprep.subr.bf16.mxu0 0
        %719 = vmatpush2.bf16.xpose.msra.mxu0 0
        %720 = vmatprep.subr.bf16.mxu0 0
        %721 = vmatpush2.bf16.xpose.msra.mxu0 0
        %722 = vmatprep.subr.bf16.mxu0 0
        %723 = vmatpush2.bf16.xpose.msra.mxu0 0
        %724 = vmatprep.subr.bf16.mxu0 0
        %725 = vmatpush2.bf16.xpose.msra.mxu0 0
        %726 = vmatprep.subr.bf16.mxu0 0
        %727 = vmatpush2.bf16.xpose.msra.mxu0 0
        %728 = vmatprep.mubr.bf16.mxu0 0
        %729 = vmatmul.mubr.bf16.gmra.mxu0 %v688
        %v730 = vpop.f32.mrf.mxu0
        %v731 = vadd.f32 0.0, %v730
        %v732 = vpop.f32.mrf.mxu0
        %v733 = vpop.f32.mrf.mxu0
        %v734 = vadd.f32 0.0, %v733
        %v735 = vpop.f32.mrf.mxu0
        %736 = vdwg.mxu0
        %738 = vset.pattern.permute.xlu0 0
        %739 = vperm.xlu0 %738, %v677
        %v740 = vpop.permute.xlu0 %739
        %743 = vset.pattern.permute.xlu0 0
        %744 = vperm.xlu0 %743, %v678
        %v745 = vpop.permute.xlu0 %744
        %v748 = vlaneseq
        %v749 = vshrl.u32 %v748, 7
        %v750 = vsub.s32 0, %v749
        %v751 = vrot.slane %v679, %v750
        %v753 = vadd.f32 %v740, %v751
        %v754 = vadd.f32 %v745, %v751
        %v755 = vmul.f32 %v731, 2.0
        %v756 = vmul.f32 %v734, 2.0
        %v757 = vsub.f32 %v753, %v755
        %v758 = vsub.f32 %v754, %v756
        %v759 = vmax.f32 %v757, 0.0
        %v760 = vmax.f32 %v758, 0.0
        %v761 = vmul.f32 %v759, -2.0
        %v762 = vmul.f32 %v760, -2.0
        %v763 = vmul.f32 %v761, 1.442695
        %v764 = vpow.pop %v763
        %v765 = vmul.f32 %v762, 1.442695
        %v766 = vpow.pop %v765
        // Predicated region
        $region53: #{tpu_custom_call.1} parent=51 // pred_check
          %p767 = pneg %p586
        $region54: #{tpu_custom_call.1} parent=51 // pred_check_branch
          %769 = sbr.rel (%p767) target = $region56
        $region55: #{tpu_custom_call.1} parent=51 // pred_region
          %v770 = vlaneseq
          %v771 = vshrl.u32 %v770, 7
          %v772 = vadd.s32 %v771, 8
          %v773 = vlaneseq
          %v774 = vand.u32 %v773, 127
          %vm775 = vcmp.lt.s32.totalorder %v771, %v774
          %vm776 = vcmp.lt.s32.totalorder %v772, %v774
          %v777 = vsel %vm775, %v674, 0.0
          %v778 = vsel %vm776, %v676, 0.0
          %v779 = vsel %vm775, %v764, 0.0
          %v780 = vsel %vm776, %v766, 0.0
          %vm781 = vcmask 130048
          %v782 = vsel %vm781, %v777, 0.0
          %v783 = vsel %vm781, %v778, 0.0
          %v784 = vadd.f32 %v782, %v783
          %v785 = vrot.slane %v784, 4
          %v786 = vadd.f32 %v784, %v785
          %v787 = vrot.slane %v786, 2
          %v788 = vadd.f32 %v786, %v787
          %v789 = vrot.slane %v788, 1
          %v790 = vadd.f32 %v788, %v789
          %vm791 = vcmask 122880
          %792 = vst.msk [vmem:[%s506] sm:$0x1] %vm791, %v790
          %v793 = vsel %vm781, %v779, 0.0
          %v794 = vsel %vm781, %v780, 0.0
          %v795 = vadd.f32 %v793, %v794
          %v796 = vrot.slane %v795, 4
          %v797 = vadd.f32 %v795, %v796
          %v798 = vrot.slane %v797, 2
          %v799 = vadd.f32 %v797, %v798
          %v800 = vrot.slane %v799, 1
          %v801 = vadd.f32 %v799, %v800
          %802 = vst.msk [vmem:[%s512] sm:$0x1] %vm791, %v801
        $region56: #{tpu_custom_call.1} parent=51 // pred_fallthru
          _
        %p803 = scmp.ne.s32.totalorder %s584, %s585
        // Predicated region
        $region57: #{tpu_custom_call.1} parent=51 // pred_check
          %p804 = pneg %p803
        $region58: #{tpu_custom_call.1} parent=51 // pred_check_branch
          %806 = sbr.rel (%p804) target = $region60
        $region59: #{tpu_custom_call.1} parent=51 // pred_region
          %vm807 = vcmask 130048
          %v808 = vsel %vm807, %v674, 0.0
          %v809 = vsel %vm807, %v676, 0.0
          %v810 = vadd.f32 %v808, %v809
          %v811 = vrot.slane %v810, 4
          %v812 = vadd.f32 %v810, %v811
          %v813 = vrot.slane %v812, 2
          %v814 = vadd.f32 %v812, %v813
          %v815 = vrot.slane %v814, 1
          %v816 = vadd.f32 %v814, %v815
          %vm817 = vcmask 122880
          %818 = vst.msk [vmem:[%s506] sm:$0x1] %vm817, %v816
          %v819 = vsel %vm807, %v764, 0.0
          %v820 = vsel %vm807, %v766, 0.0
          %v821 = vadd.f32 %v819, %v820
          %v822 = vrot.slane %v821, 4
          %v823 = vadd.f32 %v821, %v822
          %v824 = vrot.slane %v823, 2
          %v825 = vadd.f32 %v823, %v824
          %v826 = vrot.slane %v825, 1
          %v827 = vadd.f32 %v825, %v826
          %828 = vst.msk [vmem:[%s512] sm:$0x1] %vm817, %v827
        $region60: #{tpu_custom_call.1} parent=51 // pred_fallthru
          _
        // Predicated region
        $region61: #{tpu_custom_call.1} parent=51 // pred_check
          %p829 = pneg %p586
        $region62: #{tpu_custom_call.1} parent=51 // pred_check_branch
          %831 = sbr.rel (%p829) target = $region64
        $region63: #{tpu_custom_call.1} parent=51 // pred_region
          %v832 = vld [vmem:[%s525] sm:$0xf]
          %v833 = vld [vmem:[%s525 + $0x4] sm:$0xf]
          %v834 = vunpack.c.l.bf16 %v832
          %v835 = vunpack.c.l.bf16 %v833
          %v836 = vld [vmem:[%s541] sm:$0xf]
          %v837 = vld [vmem:[%s541 + $0x4] sm:$0xf]
          %v838 = vunpack.c.l.bf16 %v836
          %v839 = vunpack.c.l.bf16 %v837
          %v840 = vsub.f32 %v834, %v838
          %v841 = vsub.f32 %v835, %v839
          %v842 = vmul.f32 %v840, %v840
          %v843 = vmul.f32 %v841, %v841
          %844 = vadd.xlane.f32.xlu0 %v842
          %v845 = vpop.xlane.xlu0 %844
          %846 = vadd.xlane.f32.xlu0 %v843
          %v847 = vpop.xlane.xlu0 %846
          %vm848 = vcmask 7168
          %849 = vst.msk [vmem:[%s582] sm:$0xff] %vm848, %v845
          %850 = vst.msk [vmem:[%s582 + $0x8] sm:$0xff] %vm848, %v847
        $region64: #{tpu_custom_call.1} parent=51 // pred_fallthru
          _
        // Predicated region
        $region65: #{tpu_custom_call.1} parent=51 // pred_check
          %p851 = pneg %p803
        $region66: #{tpu_custom_call.1} parent=51 // pred_check_branch
          %853 = sbr.rel (%p851) target = $region68
        $region67: #{tpu_custom_call.1} parent=51 // pred_region
          %vm854 = vcmask 7168
          %855 = vst.msk [vmem:[%s582] sm:$0xff] %vm854, 0.0
          %856 = vst.msk [vmem:[%s582 + $0x8] sm:$0xff] %vm854, 0.0
        $region68: #{tpu_custom_call.1} parent=51 // pred_fallthru
          _
        %s857 = sand.u32 %s268, 1
        %s858 = scalar_lea.sflag [#allocation6], %s857
        %s859 = sand.u32 %s268, 1
        %s860 = scalar_lea.vmem [#allocation5], %s859
        %s861 = sand.u32 %s294, 1
        %s862 = scalar_lea.sflag [#allocation8], %s861
        %s863 = sand.u32 %s294, 1
        %s864 = scalar_lea.vmem [#allocation7], %s863
        %p865 = scmp.lt.s32.totalorder %s36, 2
        %s866 = scalar_select %p865, %s36, 2
        %s867 = smul.addr %s866, 2
        %s868 = smul.addr %s867, 8
        %s869 = scalar_lea.vmem %s12, %s868
        // Predicated region
        $region69: #{tpu_custom_call.1} parent=51 // pred_check
          %p870 = pneg %p278
        $region70: #{tpu_custom_call.1} parent=51 // pred_check_branch
          %872 = sbr.rel (%p870) target = $region72
        $region71: #{tpu_custom_call.1} parent=51 // pred_region
          %s874 = ssub.s32 16, 16
          %875 = vsyncadd %s858, %s874
          %s876 = smul.addr %s36, 16
          %s877 = scalar_lea.hbm %s10, %s876
          %s879 = sshll.u32 %s860, 4
          %s880 = int_to_ptr.vmem [resolvable:$true] %s879
          %882 = dma.vmem_to_hbm [thread:$0]  %s880, 16, %s877, %s858
        $region72: #{tpu_custom_call.1} parent=51 // pred_fallthru
          _
        // Predicated region
        $region73: #{tpu_custom_call.1} parent=51 // pred_check
          %p883 = pneg %p304
        $region74: #{tpu_custom_call.1} parent=51 // pred_check_branch
          %885 = sbr.rel (%p883) target = $region76
        $region75: #{tpu_custom_call.1} parent=51 // pred_region
          %s887 = ssub.s32 16, 16
          %888 = vsyncadd %s862, %s887
          %s889 = smul.addr %s36, 16
          %s890 = scalar_lea.hbm %s11, %s889
          %s892 = sshll.u32 %s864, 4
          %s893 = int_to_ptr.vmem [resolvable:$true] %s892
          %895 = dma.vmem_to_hbm [thread:$0]  %s893, 16, %s890, %s862
        $region76: #{tpu_custom_call.1} parent=51 // pred_fallthru
          _
        // Predicated region
        $region77: #{tpu_custom_call.1} parent=51 // pred_check
          %p896 = pneg %p330
        $region78: #{tpu_custom_call.1} parent=51 // pred_check_branch
          %898 = sbr.rel (%p896) target = $region80
        $region79: #{tpu_custom_call.1} parent=51 // pred_region
          _
        $region80: #{tpu_custom_call.1} parent=51 // pred_fallthru
          _
      $region52: #{tpu_custom_call.1} parent=5 // pred_fallthru
        _
      %p899 = scmp.le.s32.totalorder 2, %s31
      // Predicated region
      $region81: #{tpu_custom_call.1} parent=5 // pred_check
        %p900 = pneg %p899
      $region82: #{tpu_custom_call.1} parent=5 // pred_check_branch
        %902 = sbr.rel (%p900) target = $region84
      $region83: #{tpu_custom_call.1} parent=5 // pred_region
        %s903 = ssub.s32 %s31, 2
        // Predicated region
        $region85: #{tpu_custom_call.1} parent=83 // pred_check
          %p904 = pneg %p284
        $region86: #{tpu_custom_call.1} parent=83 // pred_check_branch
          %906 = sbr.rel (%p904) target = $region88
        $region87: #{tpu_custom_call.1} parent=83 // pred_region
          %s907 = sand.u32 %s269, 1
          %s908 = scalar_lea.sflag [#allocation6], %s907
          %s909 = sand.u32 %s269, 1
          %s910 = scalar_lea.vmem [#allocation5], %s909
          %911 = dma.done %s908, 16
        $region88: #{tpu_custom_call.1} parent=83 // pred_fallthru
          _
        // Predicated region
        $region89: #{tpu_custom_call.1} parent=83 // pred_check
          %p912 = pneg %p310
        $region90: #{tpu_custom_call.1} parent=83 // pred_check_branch
          %914 = sbr.rel (%p912) target = $region92
        $region91: #{tpu_custom_call.1} parent=83 // pred_region
          %s915 = sand.u32 %s295, 1
          %s916 = scalar_lea.sflag [#allocation8], %s915
          %s917 = sand.u32 %s295, 1
          %s918 = scalar_lea.vmem [#allocation7], %s917
          %919 = dma.done %s916, 16
        $region92: #{tpu_custom_call.1} parent=83 // pred_fallthru
          _
        // Predicated region
        $region93: #{tpu_custom_call.1} parent=83 // pred_check
          %p920 = pneg %p336
        $region94: #{tpu_custom_call.1} parent=83 // pred_check_branch
          %922 = sbr.rel (%p920) target = $region96
        $region95: #{tpu_custom_call.1} parent=83 // pred_region
          %p923 = scmp.lt.s32.totalorder %s37, 2
          %s924 = scalar_select %p923, %s37, 2
          %s925 = smul.addr %s924, 2
          %s926 = smul.addr %s925, 8
          %s927 = scalar_lea.vmem %s12, %s926
        $region96: #{tpu_custom_call.1} parent=83 // pred_fallthru
          _
      $region84: #{tpu_custom_call.1} parent=5 // pred_fallthru
        _
    $region6: #{tpu_custom_call.1} parent=1 // loop_footer
      %s35 = sadd.s32 1, %s31
    $region7: #{tpu_custom_call.1} parent=1 // loop_footer_branch
      %30 = sbr.rel target = $region3
    $region8: #{tpu_custom_call.1} parent=1 // loop_exit
      _
    %928 = vsyncpa [#allocation6], 1
    %s929 = scalar_lea.sflag [#allocation6], 1
    %930 = vsyncpa %s929, 1
    %931 = vsyncpa [#allocation8], 1
    %s932 = scalar_lea.sflag [#allocation8], 1
    %933 = vsyncpa %s932, 1

</llo_original>
